<compile_context>
chip_gen: v7x
topology: tpu7x:2x2x1
jax: 0.10.0
libtpu: 0.0.40
codegen_flags: <defaults>
</compile_context>

<pallas_src>
import math
import functools

import jax
import jax.numpy as jnp
from jax.experimental import pallas as pl
from jax.experimental.pallas import tpu as pltpu


def _layernorm(v, gamma, beta, eps=1e-12):
    # TF-style layernorm (epsilon inside the sqrt), matching BertLayerNorm.
    u = jnp.mean(v, axis=-1, keepdims=True)
    d = v - u
    s = jnp.mean(d * d, axis=-1, keepdims=True)
    return gamma * (d * jax.lax.rsqrt(s + eps)) + beta


def attention_kernel(x_ref, wqkv_ref, bqkv_ref, w1_ref, w2_ref, b2_ref, w3_ref,
                     vecs_ref, out_ref, *, n_heads, head_dim):
    """One grid step == one batch element (S rows).  No attention mask needed."""
    H1 = n_heads * head_dim

    x = x_ref[...]                                     # (S, E) f32
    x_b = x.astype(jnp.bfloat16)

    # ---- fused QKV projection (1/sqrt(head_dim) already folded into wq/bq) --
    qkv = jnp.dot(x_b, wqkv_ref[...],
                  preferred_element_type=jnp.float32) + bqkv_ref[...]   # (S, 3*H1) f32

    # ---- head-batched views (n_heads, S, head_dim) ---------------------------
    def heads(base):
        return jnp.stack(
            [qkv[:, base + h * head_dim: base + (h + 1) * head_dim]
             for h in range(n_heads)],
            axis=0).astype(jnp.bfloat16)

    q = heads(0)                                       # (H, S, dh) bf16 (pre-scaled)
    k = heads(H1)                                      # (H, S, dh)
    v = heads(2 * H1)                                  # (H, S, dh)

    # ---- scaled dot-product attention, all heads in one batched contraction -
    s = jnp.einsum('hmd,hnd->hmn', q, k,
                   preferred_element_type=jnp.float32)                  # (H, S, S)
    s = s - jnp.max(s, axis=-1, keepdims=True)
    p = jnp.exp(s)
    denom = jnp.sum(p, axis=-1, keepdims=True)         # >= 1 (row max subtracted)
    p = p * pl.reciprocal(denom, approx=True)          # softmax(dim=-1), EUP recip

    ctx = jnp.einsum('hmn,hnd->hmd', p.astype(jnp.bfloat16), v,
                     preferred_element_type=jnp.float32)                # (H, S, dh)

    # ---- lane-contiguous (S, H1) context -> single K=H1 matmul --------------
    ctx2d = jnp.concatenate([ctx[h] for h in range(n_heads)],
                            axis=-1).astype(jnp.bfloat16)               # (S, H1)

    vecs = vecs_ref[...]                               # (6, H1): b1, g1, be1, b3, g3, be3
    a1 = jnp.dot(ctx2d, w1_ref[...],
                 preferred_element_type=jnp.float32) + vecs[0:1]        # (S, H1)
    attn_out = _layernorm(a1 + x, vecs[1:2], vecs[2:3])

    # ---- FFN: relu(attn_out2) -> attn_out3 + residual + layernorm -----------
    h2 = jnp.dot(attn_out.astype(jnp.bfloat16), w2_ref[...],
                 preferred_element_type=jnp.float32) + b2_ref[...]      # (S, H2)
    h2 = jnp.maximum(h2, 0.0)
    a3 = jnp.dot(h2.astype(jnp.bfloat16), w3_ref[...],
                 preferred_element_type=jnp.float32) + vecs[3:4]        # (S, H1)
    out = _layernorm(a3 + attn_out, vecs[4:5], vecs[5:6])               # (S, H1) f32

    # Lane-dense output slab: pad H1 up to the (>=128-wide) out block.
    pad = out_ref.shape[-1] - out.shape[-1]
    if pad:
        out = jnp.concatenate(
            [out, jnp.zeros((out.shape[0], pad), out.dtype)], axis=-1)
    out_ref[...] = out.astype(out_ref.dtype)


def prepare_params(params, *, n_heads):
    """One-time parameter packing (outside the jitted forward).

    Fuses Q/K/V weights, folds the 1/sqrt(head_dim) scale into wq/bq, packs the
    six (1, H1) vectors into one (6, H1) slab, and casts weight matrices to
    bf16 for the MXU (accumulation stays f32 in-kernel).
    """
    H1 = params["wq"].shape[1]
    assert H1 % n_heads == 0, "hidden_dim1 must be divisible by n_heads"
    head_dim = H1 // n_heads
    scale = 1.0 / math.sqrt(head_dim)
    wdt = jnp.bfloat16

    wqkv = jnp.concatenate(
        [params["wq"] * scale, params["wk"], params["wv"]], axis=1).astype(wdt)   # (E, 3*H1)
    bqkv = jnp.concatenate(
        [params["bq"] * scale, params["bk"], params["bv"]], axis=1)               # (1, 3*H1) f32
    vecs = jnp.concatenate([params["b1"], params["g1"], params["be1"],
                            params["b3"], params["g3"], params["be3"]], axis=0)   # (6, H1) f32
    return {
        "wqkv": wqkv, "bqkv": bqkv,
        "w1": params["w1"].astype(wdt),
        "w2": params["w2"].astype(wdt), "b2": params["b2"],
        "w3": params["w3"].astype(wdt),
        "vecs": vecs,
    }


@functools.partial(jax.jit, static_argnames=("n_heads",))
def attention_forward(x, prepped, *, n_heads):
    """x: (B, S, E) float32; prepped: output of prepare_params()."""
    B, S, E = x.shape
    H1 = prepped["w1"].shape[0]
    assert E == H1, "residual attn_out1(ctx) + x requires embedding_dim == hidden_dim1"
    head_dim = H1 // n_heads
    M = B * S
    out_w = ((H1 + 127) // 128) * 128   # lane-dense (>=128 lanes) output slab

    x2d = x.reshape(M, E)

    kernel = functools.partial(attention_kernel, n_heads=n_heads, head_dim=head_dim)

    def full(a):
        # Full-array, VMEM-resident weight block (same block every grid step).
        return pl.BlockSpec(a.shape, lambda b: (0,) * a.ndim)

    grid_spec = pltpu.PrefetchScalarGridSpec(
        num_scalar_prefetch=0,
        grid=(B,),                                            # one step per batch element
        in_specs=[
            pl.BlockSpec((S, E), lambda b: (b, 0)),           # this batch's activation rows
            full(prepped["wqkv"]), full(prepped["bqkv"]),
            full(prepped["w1"]),
            full(prepped["w2"]), full(prepped["b2"]),
            full(prepped["w3"]),
            full(prepped["vecs"]),
        ],
        out_specs=pl.BlockSpec((S, out_w), lambda b: (b, 0)),
    )

    out2d = pl.pallas_call(
        kernel,
        out_shape=jax.ShapeDtypeStruct((M, out_w), jnp.float32),
        grid_spec=grid_spec,
        compiler_params=pltpu.CompilerParams(
            dimension_semantics=("parallel",),                # shard batch across TCs (v7x)
            vmem_limit_bytes=48 * 1024 * 1024,                # within v7x's 64 MiB VMEM
        ),
    )(x2d, prepped["wqkv"], prepped["bqkv"], prepped["w1"], prepped["w2"],
      prepped["b2"], prepped["w3"], prepped["vecs"])

    return out2d[:, :H1].reshape(B, S, H1)


def init_params(key, embedding_dim, hidden_dim1, hidden_dim2):
    """Deterministic synthetic params. Linear weights stored as (in, out)."""
    ks = jax.random.split(key, 10)

    def w(k, i, o):
        return jax.random.normal(k, (i, o), jnp.float32) * 0.05

    def b(k, o):
        return jax.random.normal(k, (1, o), jnp.float32) * 0.01

    return {
        "wq": w(ks[0], embedding_dim, hidden_dim1), "bq": b(ks[1], hidden_dim1),
        "wk": w(ks[2], embedding_dim, hidden_dim1), "bk": b(ks[3], hidden_dim1),
        "wv": w(ks[4], embedding_dim, hidden_dim1), "bv": b(ks[5], hidden_dim1),
        "w1": w(ks[6], hidden_dim1, hidden_dim1),   "b1": b(ks[7], hidden_dim1),
        "g1": jnp.ones((1, hidden_dim1), jnp.float32),
        "be1": jnp.zeros((1, hidden_dim1), jnp.float32),
        "w2": w(ks[8], hidden_dim1, hidden_dim2),   "b2": b(ks[9], hidden_dim2),
        "w3": w(jax.random.fold_in(key, 100), hidden_dim2, hidden_dim1),
        "b3": jnp.zeros((1, hidden_dim1), jnp.float32),
        "g3": jnp.ones((1, hidden_dim1), jnp.float32),
        "be3": jnp.zeros((1, hidden_dim1), jnp.float32),
    }


if __name__ == "__main__":
    # Small shapes consistent with the module: residual `attn_out1(...) + x`
    # requires embedding_dim == hidden_dim1.
    B, S = 2, 8
    embedding_dim = 32
    hidden_dim1 = 32
    hidden_dim2 = 64
    n_heads = 4

    key = jax.random.PRNGKey(0)
    kx, kp = jax.random.split(key)
    x = jax.random.normal(kx, (B, S, embedding_dim), jnp.float32)
    params = init_params(kp, embedding_dim, hidden_dim1, hidden_dim2)

    # One-time parameter packing (kept out of the jitted per-call path).
    prepped = prepare_params(params, n_heads=n_heads)
    prepped = jax.tree_util.tree_map(jax.block_until_ready, prepped)

    out = attention_forward(x, prepped, n_heads=n_heads)
    jax.block_until_ready(out)
    assert out.shape == (B, S, hidden_dim1)
    print("KERNEL_OK")
</pallas_src>

<mosaic_0001>
module attributes {stable_mosaic.version = 11 : i64} {
  func.func @attention_kernel(%arg0: i32, %arg1: memref<8x32xf32, #tpu.memory_space<vmem>>, %arg2: memref<32x96xbf16, #tpu.memory_space<vmem>>, %arg3: memref<1x96xf32, #tpu.memory_space<vmem>>, %arg4: memref<32x32xbf16, #tpu.memory_space<vmem>>, %arg5: memref<32x64xbf16, #tpu.memory_space<vmem>>, %arg6: memref<1x64xf32, #tpu.memory_space<vmem>>, %arg7: memref<64x32xbf16, #tpu.memory_space<vmem>>, %arg8: memref<6x32xf32, #tpu.memory_space<vmem>>, %arg9: memref<8x128xf32, #tpu.memory_space<vmem>>) attributes {dimension_semantics = [#tpu.dimension_semantics<parallel>], iteration_bounds = array<i64: 2>, scalar_prefetch = 0 : i64, scratch_operands = 0 : i64, tpu.core_type = #tpu.core_type<tc>, window_params = [{transform_indices = @transform_0, window_bounds = array<i64: 8, 32>}, {pipeline_mode = #tpu.pipeline_mode<synchronous>, transform_indices = @transform_1, window_bounds = array<i64: 32, 96>}, {pipeline_mode = #tpu.pipeline_mode<synchronous>, transform_indices = @transform_2, window_bounds = array<i64: 1, 96>}, {pipeline_mode = #tpu.pipeline_mode<synchronous>, transform_indices = @transform_3, window_bounds = array<i64: 32, 32>}, {pipeline_mode = #tpu.pipeline_mode<synchronous>, transform_indices = @transform_4, window_bounds = array<i64: 32, 64>}, {pipeline_mode = #tpu.pipeline_mode<synchronous>, transform_indices = @transform_5, window_bounds = array<i64: 1, 64>}, {pipeline_mode = #tpu.pipeline_mode<synchronous>, transform_indices = @transform_6, window_bounds = array<i64: 64, 32>}, {pipeline_mode = #tpu.pipeline_mode<synchronous>, transform_indices = @transform_7, window_bounds = array<i64: 6, 32>}, {transform_indices = @transform_8, window_bounds = array<i64: 8, 128>}]} {
    %c0 = arith.constant 0 : index
    %c0_0 = arith.constant 0 : index
    %0 = vector.load %arg1[%c0, %c0_0] : memref<8x32xf32, #tpu.memory_space<vmem>>, vector<8x32xf32>
    %1 = arith.truncf %0 : vector<8x32xf32> to vector<8x32xbf16>
    %c0_1 = arith.constant 0 : index
    %c0_2 = arith.constant 0 : index
    %2 = vector.load %arg2[%c0_1, %c0_2] : memref<32x96xbf16, #tpu.memory_space<vmem>>, vector<32x96xbf16>
    %cst = arith.constant dense<0.000000e+00> : vector<8x96xf32>
    %3 = tpu.matmul %1, %2, %cst {dimension_numbers = #tpu.dot_dimension_numbers<[1], [0], [0], [1], [0, 0, 1, 1], [], []>} : vector<8x32xbf16>, vector<32x96xbf16>, vector<8x96xf32> -> vector<8x96xf32>
    %c0_3 = arith.constant 0 : index
    %c0_4 = arith.constant 0 : index
    %4 = vector.load %arg3[%c0_3, %c0_4] : memref<1x96xf32, #tpu.memory_space<vmem>>, vector<1x96xf32>
    %5 = vector.broadcast %4 : vector<1x96xf32> to vector<8x96xf32>
    %6 = arith.addf %3, %5 : vector<8x96xf32>
    %7 = vector.extract_strided_slice %6 {offsets = [0, 0], sizes = [8, 8], strides = [1, 1]} : vector<8x96xf32> to vector<8x8xf32>
    %8 = vector.extract_strided_slice %6 {offsets = [0, 8], sizes = [8, 8], strides = [1, 1]} : vector<8x96xf32> to vector<8x8xf32>
    %9 = vector.extract_strided_slice %6 {offsets = [0, 16], sizes = [8, 8], strides = [1, 1]} : vector<8x96xf32> to vector<8x8xf32>
    %10 = vector.extract_strided_slice %6 {offsets = [0, 24], sizes = [8, 8], strides = [1, 1]} : vector<8x96xf32> to vector<8x8xf32>
    %11 = vector.shape_cast %7 : vector<8x8xf32> to vector<1x8x8xf32>
    %12 = vector.shape_cast %8 : vector<8x8xf32> to vector<1x8x8xf32>
    %13 = vector.shape_cast %9 : vector<8x8xf32> to vector<1x8x8xf32>
    %14 = vector.shape_cast %10 : vector<8x8xf32> to vector<1x8x8xf32>
    %15 = tpu.concatenate %11, %12, %13, %14 in 0 : vector<1x8x8xf32>, vector<1x8x8xf32>, vector<1x8x8xf32>, vector<1x8x8xf32> -> vector<4x8x8xf32>
    %16 = arith.truncf %15 : vector<4x8x8xf32> to vector<4x8x8xbf16>
    %17 = vector.extract_strided_slice %6 {offsets = [0, 32], sizes = [8, 8], strides = [1, 1]} : vector<8x96xf32> to vector<8x8xf32>
    %18 = vector.extract_strided_slice %6 {offsets = [0, 40], sizes = [8, 8], strides = [1, 1]} : vector<8x96xf32> to vector<8x8xf32>
    %19 = vector.extract_strided_slice %6 {offsets = [0, 48], sizes = [8, 8], strides = [1, 1]} : vector<8x96xf32> to vector<8x8xf32>
    %20 = vector.extract_strided_slice %6 {offsets = [0, 56], sizes = [8, 8], strides = [1, 1]} : vector<8x96xf32> to vector<8x8xf32>
    %21 = vector.shape_cast %17 : vector<8x8xf32> to vector<1x8x8xf32>
    %22 = vector.shape_cast %18 : vector<8x8xf32> to vector<1x8x8xf32>
    %23 = vector.shape_cast %19 : vector<8x8xf32> to vector<1x8x8xf32>
    %24 = vector.shape_cast %20 : vector<8x8xf32> to vector<1x8x8xf32>
    %25 = tpu.concatenate %21, %22, %23, %24 in 0 : vector<1x8x8xf32>, vector<1x8x8xf32>, vector<1x8x8xf32>, vector<1x8x8xf32> -> vector<4x8x8xf32>
    %26 = arith.truncf %25 : vector<4x8x8xf32> to vector<4x8x8xbf16>
    %27 = vector.extract_strided_slice %6 {offsets = [0, 64], sizes = [8, 8], strides = [1, 1]} : vector<8x96xf32> to vector<8x8xf32>
    %28 = vector.extract_strided_slice %6 {offsets = [0, 72], sizes = [8, 8], strides = [1, 1]} : vector<8x96xf32> to vector<8x8xf32>
    %29 = vector.extract_strided_slice %6 {offsets = [0, 80], sizes = [8, 8], strides = [1, 1]} : vector<8x96xf32> to vector<8x8xf32>
    %30 = vector.extract_strided_slice %6 {offsets = [0, 88], sizes = [8, 8], strides = [1, 1]} : vector<8x96xf32> to vector<8x8xf32>
    %31 = vector.shape_cast %27 : vector<8x8xf32> to vector<1x8x8xf32>
    %32 = vector.shape_cast %28 : vector<8x8xf32> to vector<1x8x8xf32>
    %33 = vector.shape_cast %29 : vector<8x8xf32> to vector<1x8x8xf32>
    %34 = vector.shape_cast %30 : vector<8x8xf32> to vector<1x8x8xf32>
    %35 = tpu.concatenate %31, %32, %33, %34 in 0 : vector<1x8x8xf32>, vector<1x8x8xf32>, vector<1x8x8xf32>, vector<1x8x8xf32> -> vector<4x8x8xf32>
    %36 = arith.truncf %35 : vector<4x8x8xf32> to vector<4x8x8xbf16>
    "tpu.trace_start"() <{level = 10 : i32, message = "hmd,hnd->hmn"}> : () -> ()
    %cst_5 = arith.constant dense<0.000000e+00> : vector<4x8x8xf32>
    %37 = tpu.matmul %16, %26, %cst_5 {dimension_numbers = #tpu.dot_dimension_numbers<[2], [2], [1], [1], [0, 0, 0, 1, 1, 1], [0], [0]>} : vector<4x8x8xbf16>, vector<4x8x8xbf16>, vector<4x8x8xf32> -> vector<4x8x8xf32>
    "tpu.trace_stop"() : () -> ()
    %cst_6 = arith.constant dense<0xFF800000> : vector<4x8xf32>
    %38 = vector.multi_reduction <maximumf>, %37, %cst_6 [2] : vector<4x8x8xf32> to vector<4x8xf32>
    %39 = vector.shape_cast %38 : vector<4x8xf32> to vector<4x8x1xf32>
    %40 = vector.broadcast %39 : vector<4x8x1xf32> to vector<4x8x8xf32>
    %41 = arith.subf %37, %40 : vector<4x8x8xf32>
    %42 = math.exp %41 : vector<4x8x8xf32>
    %cst_7 = arith.constant dense<0.000000e+00> : vector<4x8xf32>
    %43 = vector.multi_reduction <add>, %42, %cst_7 [2] : vector<4x8x8xf32> to vector<4x8xf32>
    %44 = vector.shape_cast %43 : vector<4x8xf32> to vector<4x8x1xf32>
    %45 = tpu.reciprocal %44 {approx = true} : vector<4x8x1xf32> -> vector<4x8x1xf32>
    %46 = vector.broadcast %45 : vector<4x8x1xf32> to vector<4x8x8xf32>
    %47 = arith.mulf %42, %46 : vector<4x8x8xf32>
    %48 = arith.truncf %47 : vector<4x8x8xf32> to vector<4x8x8xbf16>
    "tpu.trace_start"() <{level = 10 : i32, message = "hmn,hnd->hmd"}> : () -> ()
    %cst_8 = arith.constant dense<0.000000e+00> : vector<4x8x8xf32>
    %49 = tpu.matmul %48, %36, %cst_8 {dimension_numbers = #tpu.dot_dimension_numbers<[2], [1], [1], [2], [0, 0, 0, 1, 1, 2], [0], [0]>} : vector<4x8x8xbf16>, vector<4x8x8xbf16>, vector<4x8x8xf32> -> vector<4x8x8xf32>
    "tpu.trace_stop"() : () -> ()
    %50 = vector.extract_strided_slice %49 {offsets = [0, 0, 0], sizes = [1, 8, 8], strides = [1, 1, 1]} : vector<4x8x8xf32> to vector<1x8x8xf32>
    %51 = vector.shape_cast %50 : vector<1x8x8xf32> to vector<8x8xf32>
    %52 = vector.extract_strided_slice %49 {offsets = [1, 0, 0], sizes = [1, 8, 8], strides = [1, 1, 1]} : vector<4x8x8xf32> to vector<1x8x8xf32>
    %53 = vector.shape_cast %52 : vector<1x8x8xf32> to vector<8x8xf32>
    %54 = vector.extract_strided_slice %49 {offsets = [2, 0, 0], sizes = [1, 8, 8], strides = [1, 1, 1]} : vector<4x8x8xf32> to vector<1x8x8xf32>
    %55 = vector.shape_cast %54 : vector<1x8x8xf32> to vector<8x8xf32>
    %56 = vector.extract_strided_slice %49 {offsets = [3, 0, 0], sizes = [1, 8, 8], strides = [1, 1, 1]} : vector<4x8x8xf32> to vector<1x8x8xf32>
    %57 = vector.shape_cast %56 : vector<1x8x8xf32> to vector<8x8xf32>
    %58 = tpu.concatenate %51, %53, %55, %57 in 1 : vector<8x8xf32>, vector<8x8xf32>, vector<8x8xf32>, vector<8x8xf32> -> vector<8x32xf32>
    %59 = arith.truncf %58 : vector<8x32xf32> to vector<8x32xbf16>
    %c0_9 = arith.constant 0 : index
    %c0_10 = arith.constant 0 : index
    %60 = vector.load %arg8[%c0_9, %c0_10] : memref<6x32xf32, #tpu.memory_space<vmem>>, vector<6x32xf32>
    %c0_11 = arith.constant 0 : index
    %c0_12 = arith.constant 0 : index
    %61 = vector.load %arg4[%c0_11, %c0_12] : memref<32x32xbf16, #tpu.memory_space<vmem>>, vector<32x32xbf16>
    %cst_13 = arith.constant dense<0.000000e+00> : vector<8x32xf32>
    %62 = tpu.matmul %59, %61, %cst_13 {dimension_numbers = #tpu.dot_dimension_numbers<[1], [0], [0], [1], [0, 0, 1, 1], [], []>} : vector<8x32xbf16>, vector<32x32xbf16>, vector<8x32xf32> -> vector<8x32xf32>
    %63 = vector.extract_strided_slice %60 {offsets = [0, 0], sizes = [1, 32], strides = [1, 1]} : vector<6x32xf32> to vector<1x32xf32>
    %64 = vector.broadcast %63 : vector<1x32xf32> to vector<8x32xf32>
    %65 = arith.addf %62, %64 : vector<8x32xf32>
    %66 = arith.addf %65, %0 : vector<8x32xf32>
    %67 = vector.extract_strided_slice %60 {offsets = [1, 0], sizes = [1, 32], strides = [1, 1]} : vector<6x32xf32> to vector<1x32xf32>
    %68 = vector.extract_strided_slice %60 {offsets = [2, 0], sizes = [1, 32], strides = [1, 1]} : vector<6x32xf32> to vector<1x32xf32>
    %cst_14 = arith.constant dense<0.000000e+00> : vector<8xf32>
    %69 = vector.multi_reduction <add>, %66, %cst_14 [1] : vector<8x32xf32> to vector<8xf32>
    %70 = vector.shape_cast %69 : vector<8xf32> to vector<8x1xf32>
    %cst_15 = arith.constant 3.200000e+01 : f32
    %71 = vector.broadcast %cst_15 : f32 to vector<8x1xf32>
    %72 = arith.divf %70, %71 : vector<8x1xf32>
    %73 = vector.broadcast %72 : vector<8x1xf32> to vector<8x32xf32>
    %74 = arith.subf %66, %73 : vector<8x32xf32>
    %75 = arith.mulf %74, %74 : vector<8x32xf32>
    %cst_16 = arith.constant dense<0.000000e+00> : vector<8xf32>
    %76 = vector.multi_reduction <add>, %75, %cst_16 [1] : vector<8x32xf32> to vector<8xf32>
    %77 = vector.shape_cast %76 : vector<8xf32> to vector<8x1xf32>
    %cst_17 = arith.constant 3.200000e+01 : f32
    %78 = vector.broadcast %cst_17 : f32 to vector<8x1xf32>
    %79 = arith.divf %77, %78 : vector<8x1xf32>
    %cst_18 = arith.constant 9.99999996E-13 : f32
    %80 = vector.broadcast %cst_18 : f32 to vector<8x1xf32>
    %81 = arith.addf %79, %80 : vector<8x1xf32>
    %82 = math.rsqrt %81 : vector<8x1xf32>
    %83 = vector.broadcast %82 : vector<8x1xf32> to vector<8x32xf32>
    %84 = arith.mulf %74, %83 : vector<8x32xf32>
    %85 = vector.broadcast %67 : vector<1x32xf32> to vector<8x32xf32>
    %86 = arith.mulf %85, %84 : vector<8x32xf32>
    %87 = vector.broadcast %68 : vector<1x32xf32> to vector<8x32xf32>
    %88 = arith.addf %86, %87 : vector<8x32xf32>
    %89 = arith.truncf %88 : vector<8x32xf32> to vector<8x32xbf16>
    %c0_19 = arith.constant 0 : index
    %c0_20 = arith.constant 0 : index
    %90 = vector.load %arg5[%c0_19, %c0_20] : memref<32x64xbf16, #tpu.memory_space<vmem>>, vector<32x64xbf16>
    %cst_21 = arith.constant dense<0.000000e+00> : vector<8x64xf32>
    %91 = tpu.matmul %89, %90, %cst_21 {dimension_numbers = #tpu.dot_dimension_numbers<[1], [0], [0], [1], [0, 0, 1, 1], [], []>} : vector<8x32xbf16>, vector<32x64xbf16>, vector<8x64xf32> -> vector<8x64xf32>
    %c0_22 = arith.constant 0 : index
    %c0_23 = arith.constant 0 : index
    %92 = vector.load %arg6[%c0_22, %c0_23] : memref<1x64xf32, #tpu.memory_space<vmem>>, vector<1x64xf32>
    %93 = vector.broadcast %92 : vector<1x64xf32> to vector<8x64xf32>
    %94 = arith.addf %91, %93 : vector<8x64xf32>
    %cst_24 = arith.constant 0.000000e+00 : f32
    %95 = vector.broadcast %cst_24 : f32 to vector<8x64xf32>
    %96 = arith.maximumf %94, %95 : vector<8x64xf32>
    %97 = arith.truncf %96 : vector<8x64xf32> to vector<8x64xbf16>
    %c0_25 = arith.constant 0 : index
    %c0_26 = arith.constant 0 : index
    %98 = vector.load %arg7[%c0_25, %c0_26] : memref<64x32xbf16, #tpu.memory_space<vmem>>, vector<64x32xbf16>
    %cst_27 = arith.constant dense<0.000000e+00> : vector<8x32xf32>
    %99 = tpu.matmul %97, %98, %cst_27 {dimension_numbers = #tpu.dot_dimension_numbers<[1], [0], [0], [1], [0, 0, 1, 1], [], []>} : vector<8x64xbf16>, vector<64x32xbf16>, vector<8x32xf32> -> vector<8x32xf32>
    %100 = vector.extract_strided_slice %60 {offsets = [3, 0], sizes = [1, 32], strides = [1, 1]} : vector<6x32xf32> to vector<1x32xf32>
    %101 = vector.broadcast %100 : vector<1x32xf32> to vector<8x32xf32>
    %102 = arith.addf %99, %101 : vector<8x32xf32>
    %103 = arith.addf %102, %88 : vector<8x32xf32>
    %104 = vector.extract_strided_slice %60 {offsets = [4, 0], sizes = [1, 32], strides = [1, 1]} : vector<6x32xf32> to vector<1x32xf32>
    %105 = vector.extract_strided_slice %60 {offsets = [5, 0], sizes = [1, 32], strides = [1, 1]} : vector<6x32xf32> to vector<1x32xf32>
    %cst_28 = arith.constant dense<0.000000e+00> : vector<8xf32>
    %106 = vector.multi_reduction <add>, %103, %cst_28 [1] : vector<8x32xf32> to vector<8xf32>
    %107 = vector.shape_cast %106 : vector<8xf32> to vector<8x1xf32>
    %cst_29 = arith.constant 3.200000e+01 : f32
    %108 = vector.broadcast %cst_29 : f32 to vector<8x1xf32>
    %109 = arith.divf %107, %108 : vector<8x1xf32>
    %110 = vector.broadcast %109 : vector<8x1xf32> to vector<8x32xf32>
    %111 = arith.subf %103, %110 : vector<8x32xf32>
    %112 = arith.mulf %111, %111 : vector<8x32xf32>
    %cst_30 = arith.constant dense<0.000000e+00> : vector<8xf32>
    %113 = vector.multi_reduction <add>, %112, %cst_30 [1] : vector<8x32xf32> to vector<8xf32>
    %114 = vector.shape_cast %113 : vector<8xf32> to vector<8x1xf32>
    %cst_31 = arith.constant 3.200000e+01 : f32
    %115 = vector.broadcast %cst_31 : f32 to vector<8x1xf32>
    %116 = arith.divf %114, %115 : vector<8x1xf32>
    %cst_32 = arith.constant 9.99999996E-13 : f32
    %117 = vector.broadcast %cst_32 : f32 to vector<8x1xf32>
    %118 = arith.addf %116, %117 : vector<8x1xf32>
    %119 = math.rsqrt %118 : vector<8x1xf32>
    %120 = vector.broadcast %119 : vector<8x1xf32> to vector<8x32xf32>
    %121 = arith.mulf %111, %120 : vector<8x32xf32>
    %122 = vector.broadcast %104 : vector<1x32xf32> to vector<8x32xf32>
    %123 = arith.mulf %122, %121 : vector<8x32xf32>
    %124 = vector.broadcast %105 : vector<1x32xf32> to vector<8x32xf32>
    %125 = arith.addf %123, %124 : vector<8x32xf32>
    %cst_33 = arith.constant 0.000000e+00 : f32
    %126 = vector.broadcast %cst_33 : f32 to vector<8x96xf32>
    %127 = tpu.concatenate %125, %126 in 1 : vector<8x32xf32>, vector<8x96xf32> -> vector<8x128xf32>
    %c0_34 = arith.constant 0 : index
    %c0_35 = arith.constant 0 : index
    %128 = vector.load %arg9[%c0_34, %c0_35] : memref<8x128xf32, #tpu.memory_space<vmem>>, vector<8x128xf32>
    tpu.vector_store %arg9[%c0_34, %c0_35], %127 {strides = array<i32>} : memref<8x128xf32, #tpu.memory_space<vmem>>, vector<8x128xf32>,
    return
  }
  func.func @transform_0(%arg0: i32) -> (i32, i32) {
    %c0_i32 = arith.constant 0 : i32
    %c0_i32_0 = arith.constant 0 : i32
    return %arg0, %c0_i32 : i32, i32
  }
  func.func @transform_1(%arg0: i32) -> (i32, i32) {
    %c0_i32 = arith.constant 0 : i32
    %c0_i32_0 = arith.constant 0 : i32
    %c0_i32_1 = arith.constant 0 : i32
    return %c0_i32, %c0_i32_0 : i32, i32
  }
  func.func @transform_2(%arg0: i32) -> (i32, i32) {
    %c0_i32 = arith.constant 0 : i32
    %c0_i32_0 = arith.constant 0 : i32
    %c0_i32_1 = arith.constant 0 : i32
    return %c0_i32, %c0_i32_0 : i32, i32
  }
  func.func @transform_3(%arg0: i32) -> (i32, i32) {
    %c0_i32 = arith.constant 0 : i32
    %c0_i32_0 = arith.constant 0 : i32
    %c0_i32_1 = arith.constant 0 : i32
    return %c0_i32, %c0_i32_0 : i32, i32
  }
  func.func @transform_4(%arg0: i32) -> (i32, i32) {
    %c0_i32 = arith.constant 0 : i32
    %c0_i32_0 = arith.constant 0 : i32
    %c0_i32_1 = arith.constant 0 : i32
    return %c0_i32, %c0_i32_0 : i32, i32
  }
  func.func @transform_5(%arg0: i32) -> (i32, i32) {
    %c0_i32 = arith.constant 0 : i32
    %c0_i32_0 = arith.constant 0 : i32
    %c0_i32_1 = arith.constant 0 : i32
    return %c0_i32, %c0_i32_0 : i32, i32
  }
  func.func @transform_6(%arg0: i32) -> (i32, i32) {
    %c0_i32 = arith.constant 0 : i32
    %c0_i32_0 = arith.constant 0 : i32
    %c0_i32_1 = arith.constant 0 : i32
    return %c0_i32, %c0_i32_0 : i32, i32
  }
  func.func @transform_7(%arg0: i32) -> (i32, i32) {
    %c0_i32 = arith.constant 0 : i32
    %c0_i32_0 = arith.constant 0 : i32
    %c0_i32_1 = arith.constant 0 : i32
    return %c0_i32, %c0_i32_0 : i32, i32
  }
  func.func @transform_8(%arg0: i32) -> (i32, i32) {
    %c0_i32 = arith.constant 0 : i32
    %c0_i32_0 = arith.constant 0 : i32
    return %arg0, %c0_i32 : i32, i32
  }
}

</mosaic_0001>

<llo_original>
// kernel: attention_forward.1
$region0: #{attention_forward.1}
  #allocation0 [shape = 'u32[]', space=smem, size = 0x4, offset = 0x4, fixed_abs, tag = 'smem constant byte address 0x4 - core index']
  #allocation1 [shape = 'u32[144,128]{1,0:T(1,128)}', space=vmem, size = 0x12000, scoped, tag = 'internal scratch']
  %s0 = inlined_call_operand.vmem [shape: f32[16,32], index: 0, kind: input, shape index: {}]
  %s1 = inlined_call_operand.vmem [shape: bf16[32,96], index: 1, kind: input, shape index: {}]
  %s2 = inlined_call_operand.vmem [shape: f32[1,96], index: 2, kind: input, shape index: {}]
  %s3 = inlined_call_operand.vmem [shape: bf16[32,32], index: 3, kind: input, shape index: {}]
  %s4 = inlined_call_operand.hbm [shape: bf16[32,64], index: 4, kind: input, shape index: {}]
  %s5 = inlined_call_operand.vmem [shape: f32[1,64], index: 5, kind: input, shape index: {}]
  %s6 = inlined_call_operand.vmem [shape: bf16[64,32], index: 6, kind: input, shape index: {}]
  %s7 = inlined_call_operand.vmem [shape: f32[6,32], index: 7, kind: input, shape index: {}]
  %s8 = inlined_call_operand.vmem [shape: f32[16,128], index: 8, kind: output, shape index: {}]
  %s9 = sld [smem:[#allocation0]]
  $region69: #{attention_forward.1} parent=0
    _
  %s11 = ssub.s32 1, %s9
  %s12 = scalar_select 0, %s11, %s9
  $region1: #{attention_forward.1} parent=0
    #allocation2 [shape = 'u8[8192]{0}', space=vmem, size = 0x2000, scoped, tag = 'input window, operand 4, single buffered']
    #allocation3 [shape = 's32[2]{0}', space=sflag, size = 0x8, scoped, tag = 'scoped memory for attention_forward.1']
    %13 = vsyncpa [#allocation3], 0
    loop: start=0, step=1, limit=4
    $region2: #{attention_forward.1} parent=1 // loop_pre_header
      _
    $region3: #{attention_forward.1} parent=1 // loop_header
      %s15 = sphi 0, %s19
      %p16 = scmp.ge.s32.totalorder %s15, 4
      %s25 = sphi 0, %s27
      %s28 = sphi 0, %s25
      %s29 = sphi 0, %s28
      %s45 = sphi 0, %s29
      %s49 = sphi 0, %s49
      %s51 = sphi 0, %s49
      %s52 = sphi 0, %s51
      %s66 = sphi 0, %s52
      %s70 = sphi 0, %s70
      %s72 = sphi 0, %s70
      %s73 = sphi 0, %s72
      %s87 = sphi 0, %s73
      %s91 = sphi 0, %s91
      %s93 = sphi 0, %s91
      %s94 = sphi 0, %s93
      %s108 = sphi 0, %s94
      %s112 = sphi 0, %s112
      %s114 = sphi 0, %s112
      %s115 = sphi 0, %s114
      %s129 = sphi 0, %s115
      %s133 = sphi 0, %s133
      %s135 = sphi 0, %s133
      %s136 = sphi 0, %s135
      %s150 = sphi 0, %s136
      %s154 = sphi 0, %s154
      %s156 = sphi 0, %s154
      %s157 = sphi 0, %s156
      %s171 = sphi 0, %s157
      %s175 = sphi 0, %s175
      %s177 = sphi 0, %s175
      %s178 = sphi 0, %s177
      %s192 = sphi 0, %s178
      %s198 = sphi 0, %s200
      %s201 = sphi 0, %s198
      %s202 = sphi 0, %s201
      %s218 = sphi 0, %s202
    $region4: #{attention_forward.1} parent=1 // loop_header_branch
      %18 = sbr.rel (%p16) target = $region8
    $region5: #{attention_forward.1} parent=1 // loop_body
      %s20 = ssub.s32 %s15, 1
      %s21 = ssub.s32 %s15, 2
      %s22 = sadd.s32 %s15, 1
      %s23 = ssub.s32 %s15, %s22
      %p24 = scmp.eq.s32.totalorder %s23, 0
      %s26 = sadd.s32 %s25, 1
      %s27 = scalar_select %p24, %s25, %s26
      %p30 = pneg %p24
      %p31 = scmp.eq.s32.totalorder %s15, 1
      %p32 = por %p30, %p31
      %p33 = scmp.ne.s32.totalorder %s25, %s28
      %p34 = scmp.eq.s32.totalorder %s15, 0
      %p35 = por %p33, %p34
      %p36 = scmp.ne.s32.totalorder %s25, %s28
      %p37 = scmp.eq.s32.totalorder %s20, 1
      %p38 = por %p36, %p37
      %p39 = scmp.ne.s32.totalorder %s28, %s29
      %p40 = scmp.eq.s32.totalorder %s20, 0
      %p41 = por %p39, %p40
      %p42 = scmp.ne.s32.totalorder %s28, %s29
      %p43 = scmp.eq.s32.totalorder %s21, 1
      %p44 = por %p42, %p43
      %p46 = scmp.ne.s32.totalorder %s29, %s45
      %p47 = scmp.eq.s32.totalorder %s21, 0
      %p48 = por %p46, %p47
      %s50 = sadd.s32 %s49, 1
      %p53 = scmp.eq.s32.totalorder %s15, 1
      %p54 = scmp.ne.s32.totalorder %s49, %s51
      %p55 = scmp.eq.s32.totalorder %s15, 0
      %p56 = por %p54, %p55
      %p57 = scmp.ne.s32.totalorder %s49, %s51
      %p58 = scmp.eq.s32.totalorder %s20, 1
      %p59 = por %p57, %p58
      %p60 = scmp.ne.s32.totalorder %s51, %s52
      %p61 = scmp.eq.s32.totalorder %s20, 0
      %p62 = por %p60, %p61
      %p63 = scmp.ne.s32.totalorder %s51, %s52
      %p64 = scmp.eq.s32.totalorder %s21, 1
      %p65 = por %p63, %p64
      %p67 = scmp.ne.s32.totalorder %s52, %s66
      %p68 = scmp.eq.s32.totalorder %s21, 0
      %p69 = por %p67, %p68
      %s71 = sadd.s32 %s70, 1
      %p74 = scmp.eq.s32.totalorder %s15, 1
      %p75 = scmp.ne.s32.totalorder %s70, %s72
      %p76 = scmp.eq.s32.totalorder %s15, 0
      %p77 = por %p75, %p76
      %p78 = scmp.ne.s32.totalorder %s70, %s72
      %p79 = scmp.eq.s32.totalorder %s20, 1
      %p80 = por %p78, %p79
      %p81 = scmp.ne.s32.totalorder %s72, %s73
      %p82 = scmp.eq.s32.totalorder %s20, 0
      %p83 = por %p81, %p82
      %p84 = scmp.ne.s32.totalorder %s72, %s73
      %p85 = scmp.eq.s32.totalorder %s21, 1
      %p86 = por %p84, %p85
      %p88 = scmp.ne.s32.totalorder %s73, %s87
      %p89 = scmp.eq.s32.totalorder %s21, 0
      %p90 = por %p88, %p89
      %s92 = sadd.s32 %s91, 1
      %p95 = scmp.eq.s32.totalorder %s15, 1
      %p96 = scmp.ne.s32.totalorder %s91, %s93
      %p97 = scmp.eq.s32.totalorder %s15, 0
      %p98 = por %p96, %p97
      %p99 = scmp.ne.s32.totalorder %s91, %s93
      %p100 = scmp.eq.s32.totalorder %s20, 1
      %p101 = por %p99, %p100
      %p102 = scmp.ne.s32.totalorder %s93, %s94
      %p103 = scmp.eq.s32.totalorder %s20, 0
      %p104 = por %p102, %p103
      %p105 = scmp.ne.s32.totalorder %s93, %s94
      %p106 = scmp.eq.s32.totalorder %s21, 1
      %p107 = por %p105, %p106
      %p109 = scmp.ne.s32.totalorder %s94, %s108
      %p110 = scmp.eq.s32.totalorder %s21, 0
      %p111 = por %p109, %p110
      %s113 = sadd.s32 %s112, 1
      %p116 = scmp.eq.s32.totalorder %s15, 1
      %p117 = scmp.ne.s32.totalorder %s112, %s114
      %p118 = scmp.eq.s32.totalorder %s15, 0
      %p119 = por %p117, %p118
      %p120 = scmp.ne.s32.totalorder %s112, %s114
      %p121 = scmp.eq.s32.totalorder %s20, 1
      %p122 = por %p120, %p121
      %p123 = scmp.ne.s32.totalorder %s114, %s115
      %p124 = scmp.eq.s32.totalorder %s20, 0
      %p125 = por %p123, %p124
      %p126 = scmp.ne.s32.totalorder %s114, %s115
      %p127 = scmp.eq.s32.totalorder %s21, 1
      %p128 = por %p126, %p127
      %p130 = scmp.ne.s32.totalorder %s115, %s129
      %p131 = scmp.eq.s32.totalorder %s21, 0
      %p132 = por %p130, %p131
      %s134 = sadd.s32 %s133, 1
      %p137 = scmp.eq.s32.totalorder %s15, 1
      %p138 = scmp.ne.s32.totalorder %s133, %s135
      %p139 = scmp.eq.s32.totalorder %s15, 0
      %p140 = por %p138, %p139
      %p141 = scmp.ne.s32.totalorder %s133, %s135
      %p142 = scmp.eq.s32.totalorder %s20, 1
      %p143 = por %p141, %p142
      %p144 = scmp.ne.s32.totalorder %s135, %s136
      %p145 = scmp.eq.s32.totalorder %s20, 0
      %p146 = por %p144, %p145
      %p147 = scmp.ne.s32.totalorder %s135, %s136
      %p148 = scmp.eq.s32.totalorder %s21, 1
      %p149 = por %p147, %p148
      %p151 = scmp.ne.s32.totalorder %s136, %s150
      %p152 = scmp.eq.s32.totalorder %s21, 0
      %p153 = por %p151, %p152
      %s155 = sadd.s32 %s154, 1
      %p158 = scmp.eq.s32.totalorder %s15, 1
      %p159 = scmp.ne.s32.totalorder %s154, %s156
      %p160 = scmp.eq.s32.totalorder %s15, 0
      %p161 = por %p159, %p160
      %p162 = scmp.ne.s32.totalorder %s154, %s156
      %p163 = scmp.eq.s32.totalorder %s20, 1
      %p164 = por %p162, %p163
      %p165 = scmp.ne.s32.totalorder %s156, %s157
      %p166 = scmp.eq.s32.totalorder %s20, 0
      %p167 = por %p165, %p166
      %p168 = scmp.ne.s32.totalorder %s156, %s157
      %p169 = scmp.eq.s32.totalorder %s21, 1
      %p170 = por %p168, %p169
      %p172 = scmp.ne.s32.totalorder %s157, %s171
      %p173 = scmp.eq.s32.totalorder %s21, 0
      %p174 = por %p172, %p173
      %s176 = sadd.s32 %s175, 1
      %p179 = scmp.eq.s32.totalorder %s15, 1
      %p180 = scmp.ne.s32.totalorder %s175, %s177
      %p181 = scmp.eq.s32.totalorder %s15, 0
      %p182 = por %p180, %p181
      %p183 = scmp.ne.s32.totalorder %s175, %s177
      %p184 = scmp.eq.s32.totalorder %s20, 1
      %p185 = por %p183, %p184
      %p186 = scmp.ne.s32.totalorder %s177, %s178
      %p187 = scmp.eq.s32.totalorder %s20, 0
      %p188 = por %p186, %p187
      %p189 = scmp.ne.s32.totalorder %s177, %s178
      %p190 = scmp.eq.s32.totalorder %s21, 1
      %p191 = por %p189, %p190
      %p193 = scmp.ne.s32.totalorder %s178, %s192
      %p194 = scmp.eq.s32.totalorder %s21, 0
      %p195 = por %p193, %p194
      %s196 = ssub.s32 %s15, %s22
      %p197 = scmp.eq.s32.totalorder %s196, 0
      %s199 = sadd.s32 %s198, 1
      %s200 = scalar_select %p197, %s198, %s199
      %p203 = pneg %p197
      %p204 = scmp.eq.s32.totalorder %s15, 1
      %p205 = por %p203, %p204
      %p206 = scmp.ne.s32.totalorder %s198, %s201
      %p207 = scmp.eq.s32.totalorder %s15, 0
      %p208 = por %p206, %p207
      %p209 = scmp.ne.s32.totalorder %s198, %s201
      %p210 = scmp.eq.s32.totalorder %s20, 1
      %p211 = por %p209, %p210
      %p212 = scmp.ne.s32.totalorder %s201, %s202
      %p213 = scmp.eq.s32.totalorder %s20, 0
      %p214 = por %p212, %p213
      %p215 = scmp.ne.s32.totalorder %s201, %s202
      %p216 = scmp.eq.s32.totalorder %s21, 1
      %p217 = por %p215, %p216
      %p219 = scmp.ne.s32.totalorder %s202, %s218
      %p220 = scmp.eq.s32.totalorder %s21, 0
      %p221 = por %p219, %p220
      %p222 = scmp.le.s32.totalorder 1, %s15
      %p223 = scmp.lt.s32.totalorder %s15, 3
      %p224 = pnand %p222, %p223
      %p225 = pneg %p224
      // Predicated region
      $region9: #{attention_forward.1} parent=5 // pred_check
        _
      $region10: #{attention_forward.1} parent=5 // pred_check_branch
        %227 = sbr.rel (%p224) target = $region12
      $region11: #{attention_forward.1} parent=5 // pred_region
        %s228 = ssub.s32 %s15, 1
        // Predicated region
        $region13: #{attention_forward.1} parent=11 // pred_check
          %p229 = pneg %p62
        $region14: #{attention_forward.1} parent=11 // pred_check_branch
          %231 = sbr.rel (%p229) target = $region16
        $region15: #{attention_forward.1} parent=11 // pred_region
          _
        $region16: #{attention_forward.1} parent=11 // pred_fallthru
          _
        // Predicated region
        $region17: #{attention_forward.1} parent=11 // pred_check
          %p232 = pneg %p83
        $region18: #{attention_forward.1} parent=11 // pred_check_branch
          %234 = sbr.rel (%p232) target = $region20
        $region19: #{attention_forward.1} parent=11 // pred_region
          _
        $region20: #{attention_forward.1} parent=11 // pred_fallthru
          _
        // Predicated region
        $region21: #{attention_forward.1} parent=11 // pred_check
          %p235 = pneg %p104
        $region22: #{attention_forward.1} parent=11 // pred_check_branch
          %237 = sbr.rel (%p235) target = $region24
        $region23: #{attention_forward.1} parent=11 // pred_region
          _
        $region24: #{attention_forward.1} parent=11 // pred_fallthru
          _
        // Predicated region
        $region25: #{attention_forward.1} parent=11 // pred_check
          %p238 = pneg %p125
        $region26: #{attention_forward.1} parent=11 // pred_check_branch
          %240 = sbr.rel (%p238) target = $region28
        $region27: #{attention_forward.1} parent=11 // pred_region
          %s242 = ssub.s32 256, 256
          %243 = vsyncadd [#allocation3], %s242
          %s244 = sshll.u32 [#allocation2], 4
          %s245 = int_to_ptr.vmem [resolvable:$true] %s244
          %250 = dma.hbm_to_vmem [thread:$0]  %s4, 256, %s245, [#allocation3], 64, 64, 4
        $region28: #{attention_forward.1} parent=11 // pred_fallthru
          _
        // Predicated region
        $region29: #{attention_forward.1} parent=11 // pred_check
          %p251 = pneg %p146
        $region30: #{attention_forward.1} parent=11 // pred_check_branch
          %253 = sbr.rel (%p251) target = $region32
        $region31: #{attention_forward.1} parent=11 // pred_region
          _
        $region32: #{attention_forward.1} parent=11 // pred_fallthru
          _
        // Predicated region
        $region33: #{attention_forward.1} parent=11 // pred_check
          %p254 = pneg %p167
        $region34: #{attention_forward.1} parent=11 // pred_check_branch
          %256 = sbr.rel (%p254) target = $region36
        $region35: #{attention_forward.1} parent=11 // pred_region
          _
        $region36: #{attention_forward.1} parent=11 // pred_fallthru
          _
        // Predicated region
        $region37: #{attention_forward.1} parent=11 // pred_check
          %p257 = pneg %p188
        $region38: #{attention_forward.1} parent=11 // pred_check_branch
          %259 = sbr.rel (%p257) target = $region40
        $region39: #{attention_forward.1} parent=11 // pred_region
          _
        $region40: #{attention_forward.1} parent=11 // pred_fallthru
          _
      $region12: #{attention_forward.1} parent=5 // pred_fallthru
        _
      %p260 = scmp.lt.s32.totalorder %s15, 2
      // Predicated region
      $region41: #{attention_forward.1} parent=5 // pred_check
        %p261 = pneg %p260
      $region42: #{attention_forward.1} parent=5 // pred_check_branch
        %263 = sbr.rel (%p261) target = $region44
      $region43: #{attention_forward.1} parent=5 // pred_region
        // Predicated region
        $region45: #{attention_forward.1} parent=43 // pred_check
          %p264 = pneg %p35
        $region46: #{attention_forward.1} parent=43 // pred_check_branch
          %266 = sbr.rel (%p264) target = $region48
        $region47: #{attention_forward.1} parent=43 // pred_region
          %p267 = scmp.lt.s32.totalorder %s15, 1
          %s268 = scalar_select %p267, %s15, 1
          %s269 = smul.addr %s268, 8
          %s270 = scalar_lea.vmem %s0, %s269
        $region48: #{attention_forward.1} parent=43 // pred_fallthru
          _
      $region44: #{attention_forward.1} parent=5 // pred_fallthru
        _
      %p271 = scmp.le.s32.totalorder 1, %s15
      %p272 = scmp.lt.s32.totalorder %s15, 3
      %p273 = pnand %p271, %p272
      %p274 = pneg %p273
      // Predicated region
      $region49: #{attention_forward.1} parent=5 // pred_check
        _
      $region50: #{attention_forward.1} parent=5 // pred_check_branch
        %276 = sbr.rel (%p273) target = $region52
      $region51: #{attention_forward.1} parent=5 // pred_region
        %s277 = ssub.s32 %s15, 1
        // Predicated region
        $region53: #{attention_forward.1} parent=51 // pred_check
          %p278 = pneg %p125
        $region54: #{attention_forward.1} parent=51 // pred_check_branch
          %280 = sbr.rel (%p278) target = $region56
        $region55: #{attention_forward.1} parent=51 // pred_region
          %281 = dma.done [#allocation3], 256
        $region56: #{attention_forward.1} parent=51 // pred_fallthru
          _
        %p282 = scmp.lt.s32.totalorder %s20, 1
        %s283 = scalar_select %p282, %s20, 1
        %s284 = smul.addr %s283, 8
        %s285 = scalar_lea.vmem %s0, %s284
        %p286 = pneg %p41
        %p287 = pneg %p38
        %p288 = pneg %p62
        %p289 = pneg %p59
        %p290 = pneg %p83
        %p291 = pneg %p80
        %p292 = pneg %p104
        %p293 = pneg %p101
        %p294 = pneg %p125
        %p295 = pneg %p122
        %p296 = pneg %p146
        %p297 = pneg %p143
        %p298 = pneg %p167
        %p299 = pneg %p164
        %p300 = pneg %p188
        %p301 = pneg %p185
        %p302 = pneg %p214
        %p303 = pneg %p211
        %p304 = scmp.lt.s32.totalorder %s20, 1
        %s305 = scalar_select %p304, %s20, 1
        %s306 = smul.addr %s305, 8
        %s307 = scalar_lea.vmem %s8, %s306
        %p308 = scmp.lt.s32.totalorder %s20, 1
        %s309 = scalar_select %p308, %s20, 1
        %s310 = smul.addr %s309, 8
        %s311 = scalar_lea.vmem %s0, %s310
        %p312 = scmp.lt.s32.totalorder %s20, 1
        %s313 = scalar_select %p312, %s20, 1
        %s314 = smul.addr %s313, 8
        %s315 = scalar_lea.vmem %s8, %s314
        %v317 = vld [vmem:[%s311] sm:$0xff]
        %v318 = vpack.c.bf16 %v317, %v317
        %v319 = vld [vmem:[%s1] sm:$0xf]
        %v320 = vld [vmem:[%s1 + $0x4] sm:$0xf]
        %v321 = vld [vmem:[%s1 + $0x8] sm:$0xf]
        %v322 = vld [vmem:[%s1 + $0xc] sm:$0xf]
        %v323 = vld [vmem:[%s2] sm:$0x1]
        %v325 = vlaneseq
        %v326 = vshrl.u32 %v325, 7
        %v327 = vsub.s32 0, %v326
        %v328 = vrot.slane %v323, %v327
        %v334 = vunpack.c.l.b16 %v319
        %v335 = vunpack.c.l.b16 %v320
        %v336 = vunpack.c.l.b16 %v321
        %v337 = vunpack.c.l.b16 %v322
        %v338 = vpack.c.b16 %v335, %v334
        %v339 = vpack.c.b16 %v337, %v336
        %vm342 = vcmask 261120
        %v344 = vsel %vm342, %v318, 0
        %346 = vmatprep.subr.bf16.mxu0 0
        %347 = vmatpush1.bf16.msra.mxu0 %v338
        %348 = vmatprep.subr.bf16.mxu0 0
        %349 = vmatpush1.bf16.msra.mxu0 %v339
        %350 = vmatprep.subr.bf16.mxu0 0
        %351 = vmatpush1.bf16.msra.mxu0 0
        %352 = vmatprep.subr.bf16.mxu0 0
        %353 = vmatpush1.bf16.msra.mxu0 0
        %354 = vmatprep.subr.bf16.mxu0 0
        %355 = vmatpush1.bf16.msra.mxu0 0
        %356 = vmatprep.subr.bf16.mxu0 0
        %357 = vmatpush1.bf16.msra.mxu0 0
        %358 = vmatprep.subr.bf16.mxu0 0
        %359 = vmatpush1.bf16.msra.mxu0 0
        %360 = vmatprep.subr.bf16.mxu0 0
        %361 = vmatpush1.bf16.msra.mxu0 0
        %362 = vmatprep.subr.bf16.mxu0 0
        %363 = vmatpush1.bf16.msra.mxu0 0
        %364 = vmatprep.subr.bf16.mxu0 0
        %365 = vmatpush1.bf16.msra.mxu0 0
        %366 = vmatprep.subr.bf16.mxu0 0
        %367 = vmatpush1.bf16.msra.mxu0 0
        %368 = vmatprep.subr.bf16.mxu0 0
        %369 = vmatpush1.bf16.msra.mxu0 0
        %370 = vmatprep.subr.bf16.mxu0 0
        %371 = vmatpush1.bf16.msra.mxu0 0
        %372 = vmatprep.subr.bf16.mxu0 0
        %373 = vmatpush1.bf16.msra.mxu0 0
        %374 = vmatprep.subr.bf16.mxu0 0
        %375 = vmatpush1.bf16.msra.mxu0 0
        %376 = vmatprep.subr.bf16.mxu0 0
        %377 = vmatpush1.bf16.msra.mxu0 0
        %378 = vmatprep.mubr.bf16.mxu0 0
        %379 = vmatmul.mubr.bf16.gmra.mrb[0].mxu0 %v344
        %v380 = vpop.f32.mrb[0].mxu0
        %v381 = vadd.f32 %v328, %v380
        %v382 = vpop.f32.mrb[0].mxu0
        %v383 = vpop.f32.mrb[0].mxu0
        %v384 = vpop.f32.mrb[0].mxu0
        %385 = vdwg.mxu0
        %387 = vrot.lane.b32.xlu0 %v381, 120
        %v388 = vpop.permute.xlu0 %387
        %390 = vrot.lane.b32.xlu0 %v381, 112
        %v391 = vpop.permute.xlu0 %390
        %393 = vrot.lane.b32.xlu0 %v381, 104
        %v394 = vpop.permute.xlu0 %393
        %v396 = vpack.c.bf16 %v381, %v381
        %v397 = vpack.c.bf16 %v388, %v388
        %v398 = vpack.c.bf16 %v391, %v391
        %v399 = vpack.c.bf16 %v394, %v394
        %401 = vrot.lane.b32.xlu0 %v396, 96
        %v402 = vpop.permute.xlu0 %401
        %vm403 = vcmask 64512
        %v405 = vsel %vm403, %v396, 0
        %v408 = vsel %vm403, %v402, 0
        %410 = vmatprep.subr.bf16.mxu0 0
        %411 = vmatpush1.bf16.xpose.msra.mxu0 %v408
        %412 = vmatprep.subr.bf16.mxu0 0
        %413 = vmatpush1.bf16.xpose.msra.mxu0 0
        %414 = vmatprep.subr.bf16.mxu0 0
        %415 = vmatpush1.bf16.xpose.msra.mxu0 0
        %416 = vmatprep.subr.bf16.mxu0 0
        %417 = vmatpush1.bf16.xpose.msra.mxu0 0
        %418 = vmatprep.subr.bf16.mxu0 0
        %419 = vmatpush1.bf16.xpose.msra.mxu0 0
        %420 = vmatprep.subr.bf16.mxu0 0
        %421 = vmatpush1.bf16.xpose.msra.mxu0 0
        %422 = vmatprep.subr.bf16.mxu0 0
        %423 = vmatpush1.bf16.xpose.msra.mxu0 0
        %424 = vmatprep.subr.bf16.mxu0 0
        %425 = vmatpush1.bf16.xpose.msra.mxu0 0
        %426 = vmatprep.subr.bf16.mxu0 0
        %427 = vmatpush1.bf16.xpose.msra.mxu0 0
        %428 = vmatprep.subr.bf16.mxu0 0
        %429 = vmatpush1.bf16.xpose.msra.mxu0 0
        %430 = vmatprep.subr.bf16.mxu0 0
        %431 = vmatpush1.bf16.xpose.msra.mxu0 0
        %432 = vmatprep.subr.bf16.mxu0 0
        %433 = vmatpush1.bf16.xpose.msra.mxu0 0
        %434 = vmatprep.subr.bf16.mxu0 0
        %435 = vmatpush1.bf16.xpose.msra.mxu0 0
        %436 = vmatprep.subr.bf16.mxu0 0
        %437 = vmatpush1.bf16.xpose.msra.mxu0 0
        %438 = vmatprep.subr.bf16.mxu0 0
        %439 = vmatpush1.bf16.xpose.msra.mxu0 0
        %440 = vmatprep.subr.bf16.mxu0 0
        %441 = vmatpush1.bf16.xpose.msra.mxu0 0
        %442 = vmatprep.mubr.bf16.mxu0 0
        %443 = vmatmul.mubr.bf16.gmra.mrb[0].mxu0 %v405
        %v444 = vpop.f32.mrb[0].mxu0
        %v445 = vadd.f32 0.0, %v444
        %v446 = vpop.f32.mrb[0].mxu0
        %v447 = vpop.f32.mrb[0].mxu0
        %v448 = vpop.f32.mrb[0].mxu0
        %449 = vdwg.mxu0
        %451 = vrot.lane.b32.xlu0 %v397, 96
        %v452 = vpop.permute.xlu0 %451
        %v454 = vsel %vm403, %v397, 0
        %v457 = vsel %vm403, %v452, 0
        %459 = vmatprep.subr.bf16.mxu0 0
        %460 = vmatpush1.bf16.xpose.msra.mxu0 %v457
        %461 = vmatprep.subr.bf16.mxu0 0
        %462 = vmatpush1.bf16.xpose.msra.mxu0 0
        %463 = vmatprep.subr.bf16.mxu0 0
        %464 = vmatpush1.bf16.xpose.msra.mxu0 0
        %465 = vmatprep.subr.bf16.mxu0 0
        %466 = vmatpush1.bf16.xpose.msra.mxu0 0
        %467 = vmatprep.subr.bf16.mxu0 0
        %468 = vmatpush1.bf16.xpose.msra.mxu0 0
        %469 = vmatprep.subr.bf16.mxu0 0
        %470 = vmatpush1.bf16.xpose.msra.mxu0 0
        %471 = vmatprep.subr.bf16.mxu0 0
        %472 = vmatpush1.bf16.xpose.msra.mxu0 0
        %473 = vmatprep.subr.bf16.mxu0 0
        %474 = vmatpush1.bf16.xpose.msra.mxu0 0
        %475 = vmatprep.subr.bf16.mxu0 0
        %476 = vmatpush1.bf16.xpose.msra.mxu0 0
        %477 = vmatprep.subr.bf16.mxu0 0
        %478 = vmatpush1.bf16.xpose.msra.mxu0 0
        %479 = vmatprep.subr.bf16.mxu0 0
        %480 = vmatpush1.bf16.xpose.msra.mxu0 0
        %481 = vmatprep.subr.bf16.mxu0 0
        %482 = vmatpush1.bf16.xpose.msra.mxu0 0
        %483 = vmatprep.subr.bf16.mxu0 0
        %484 = vmatpush1.bf16.xpose.msra.mxu0 0
        %485 = vmatprep.subr.bf16.mxu0 0
        %486 = vmatpush1.bf16.xpose.msra.mxu0 0
        %487 = vmatprep.subr.bf16.mxu0 0
        %488 = vmatpush1.bf16.xpose.msra.mxu0 0
        %489 = vmatprep.subr.bf16.mxu0 0
        %490 = vmatpush1.bf16.xpose.msra.mxu0 0
        %491 = vmatprep.mubr.bf16.mxu0 0
        %492 = vmatmul.mubr.bf16.gmra.mrb[0].mxu0 %v454
        %v493 = vpop.f32.mrb[0].mxu0
        %v494 = vadd.f32 0.0, %v493
        %v495 = vpop.f32.mrb[0].mxu0
        %v496 = vpop.f32.mrb[0].mxu0
        %v497 = vpop.f32.mrb[0].mxu0
        %498 = vdwg.mxu0
        %500 = vrot.lane.b32.xlu0 %v398, 96
        %v501 = vpop.permute.xlu0 %500
        %v503 = vsel %vm403, %v398, 0
        %v506 = vsel %vm403, %v501, 0
        %508 = vmatprep.subr.bf16.mxu0 0
        %509 = vmatpush1.bf16.xpose.msra.mxu0 %v506
        %510 = vmatprep.subr.bf16.mxu0 0
        %511 = vmatpush1.bf16.xpose.msra.mxu0 0
        %512 = vmatprep.subr.bf16.mxu0 0
        %513 = vmatpush1.bf16.xpose.msra.mxu0 0
        %514 = vmatprep.subr.bf16.mxu0 0
        %515 = vmatpush1.bf16.xpose.msra.mxu0 0
        %516 = vmatprep.subr.bf16.mxu0 0
        %517 = vmatpush1.bf16.xpose.msra.mxu0 0
        %518 = vmatprep.subr.bf16.mxu0 0
        %519 = vmatpush1.bf16.xpose.msra.mxu0 0
        %520 = vmatprep.subr.bf16.mxu0 0
        %521 = vmatpush1.bf16.xpose.msra.mxu0 0
        %522 = vmatprep.subr.bf16.mxu0 0
        %523 = vmatpush1.bf16.xpose.msra.mxu0 0
        %524 = vmatprep.subr.bf16.mxu0 0
        %525 = vmatpush1.bf16.xpose.msra.mxu0 0
        %526 = vmatprep.subr.bf16.mxu0 0
        %527 = vmatpush1.bf16.xpose.msra.mxu0 0
        %528 = vmatprep.subr.bf16.mxu0 0
        %529 = vmatpush1.bf16.xpose.msra.mxu0 0
        %530 = vmatprep.subr.bf16.mxu0 0
        %531 = vmatpush1.bf16.xpose.msra.mxu0 0
        %532 = vmatprep.subr.bf16.mxu0 0
        %533 = vmatpush1.bf16.xpose.msra.mxu0 0
        %534 = vmatprep.subr.bf16.mxu0 0
        %535 = vmatpush1.bf16.xpose.msra.mxu0 0
        %536 = vmatprep.subr.bf16.mxu0 0
        %537 = vmatpush1.bf16.xpose.msra.mxu0 0
        %538 = vmatprep.subr.bf16.mxu0 0
        %539 = vmatpush1.bf16.xpose.msra.mxu0 0
        %540 = vmatprep.mubr.bf16.mxu0 0
        %541 = vmatmul.mubr.bf16.gmra.mrb[0].mxu0 %v503
        %v542 = vpop.f32.mrb[0].mxu0
        %v543 = vadd.f32 0.0, %v542
        %v544 = vpop.f32.mrb[0].mxu0
        %v545 = vpop.f32.mrb[0].mxu0
        %v546 = vpop.f32.mrb[0].mxu0
        %547 = vdwg.mxu0
        %549 = vrot.lane.b32.xlu0 %v399, 96
        %v550 = vpop.permute.xlu0 %549
        %v552 = vsel %vm403, %v399, 0
        %v555 = vsel %vm403, %v550, 0
        %557 = vmatprep.subr.bf16.mxu0 0
        %558 = vmatpush1.bf16.xpose.msra.mxu0 %v555
        %559 = vmatprep.subr.bf16.mxu0 0
        %560 = vmatpush1.bf16.xpose.msra.mxu0 0
        %561 = vmatprep.subr.bf16.mxu0 0
        %562 = vmatpush1.bf16.xpose.msra.mxu0 0
        %563 = vmatprep.subr.bf16.mxu0 0
        %564 = vmatpush1.bf16.xpose.msra.mxu0 0
        %565 = vmatprep.subr.bf16.mxu0 0
        %566 = vmatpush1.bf16.xpose.msra.mxu0 0
        %567 = vmatprep.subr.bf16.mxu0 0
        %568 = vmatpush1.bf16.xpose.msra.mxu0 0
        %569 = vmatprep.subr.bf16.mxu0 0
        %570 = vmatpush1.bf16.xpose.msra.mxu0 0
        %571 = vmatprep.subr.bf16.mxu0 0
        %572 = vmatpush1.bf16.xpose.msra.mxu0 0
        %573 = vmatprep.subr.bf16.mxu0 0
        %574 = vmatpush1.bf16.xpose.msra.mxu0 0
        %575 = vmatprep.subr.bf16.mxu0 0
        %576 = vmatpush1.bf16.xpose.msra.mxu0 0
        %577 = vmatprep.subr.bf16.mxu0 0
        %578 = vmatpush1.bf16.xpose.msra.mxu0 0
        %579 = vmatprep.subr.bf16.mxu0 0
        %580 = vmatpush1.bf16.xpose.msra.mxu0 0
        %581 = vmatprep.subr.bf16.mxu0 0
        %582 = vmatpush1.bf16.xpose.msra.mxu0 0
        %583 = vmatprep.subr.bf16.mxu0 0
        %584 = vmatpush1.bf16.xpose.msra.mxu0 0
        %585 = vmatprep.subr.bf16.mxu0 0
        %586 = vmatpush1.bf16.xpose.msra.mxu0 0
        %587 = vmatprep.subr.bf16.mxu0 0
        %588 = vmatpush1.bf16.xpose.msra.mxu0 0
        %589 = vmatprep.mubr.bf16.mxu0 0
        %590 = vmatmul.mubr.bf16.gmra.mrb[0].mxu0 %v552
        %v591 = vpop.f32.mrb[0].mxu0
        %v592 = vadd.f32 0.0, %v591
        %v593 = vpop.f32.mrb[0].mxu0
        %v594 = vpop.f32.mrb[0].mxu0
        %v595 = vpop.f32.mrb[0].mxu0
        %596 = vdwg.mxu0
        %v597 = vsel %vm403, %v445, -inf
        %598 = vmax.xlane.f32.xlu0 %v597
        %v599 = vpop.xlane.xlu0 %598
        %v600 = vsel %vm403, %v494, -inf
        %601 = vmax.xlane.f32.xlu0 %v600
        %v602 = vpop.xlane.xlu0 %601
        %v603 = vsel %vm403, %v543, -inf
        %604 = vmax.xlane.f32.xlu0 %v603
        %v605 = vpop.xlane.xlu0 %604
        %v606 = vsel %vm403, %v592, -inf
        %607 = vmax.xlane.f32.xlu0 %v606
        %v608 = vpop.xlane.xlu0 %607
        %v609 = vsub.f32 %v445, %v599
        %v610 = vsub.f32 %v494, %v602
        %v611 = vsub.f32 %v543, %v605
        %v612 = vsub.f32 %v592, %v608
        %v613 = vmul.f32 %v609, 1.442695
        %v614 = vpow.pop %v613
        %v615 = vmul.f32 %v610, 1.442695
        %v616 = vpow.pop %v615
        %v617 = vmul.f32 %v611, 1.442695
        %v618 = vpow.pop %v617
        %v619 = vmul.f32 %v612, 1.442695
        %v620 = vpow.pop %v619
        %v621 = vsel %vm403, %v614, 0.0
        %622 = vadd.xlane.f32.xlu0 %v621
        %v623 = vpop.xlane.xlu0 %622
        %v624 = vsel %vm403, %v616, 0.0
        %625 = vadd.xlane.f32.xlu0 %v624
        %v626 = vpop.xlane.xlu0 %625
        %v627 = vsel %vm403, %v618, 0.0
        %628 = vadd.xlane.f32.xlu0 %v627
        %v629 = vpop.xlane.xlu0 %628
        %v630 = vsel %vm403, %v620, 0.0
        %631 = vadd.xlane.f32.xlu0 %v630
        %v632 = vpop.xlane.xlu0 %631
        %v633 = vrcp.pop %v623
        %v634 = vrcp.pop %v626
        %v635 = vrcp.pop %v629
        %v636 = vrcp.pop %v632
        %v637 = vmul.f32 %v614, %v633
        %v638 = vmul.f32 %v616, %v634
        %v639 = vmul.f32 %v618, %v635
        %v640 = vmul.f32 %v620, %v636
        %v641 = vpack.c.bf16 %v637, %v637
        %v642 = vpack.c.bf16 %v638, %v638
        %v643 = vpack.c.bf16 %v639, %v639
        %v644 = vpack.c.bf16 %v640, %v640
        %645 = vrot.lane.b32.xlu0 %v396, 64
        %v646 = vpop.permute.xlu0 %645
        %v648 = vsel %vm403, %v641, 0
        %vm650 = vcmask 1043456
        %v652 = vsel %vm650, %v646, 0
        %654 = vmatprep.subr.bf16.mxu0 0
        %655 = vmatpush1.bf16.msra.mxu0 %v652
        %656 = vmatprep.subr.bf16.mxu0 0
        %657 = vmatpush1.bf16.msra.mxu0 0
        %658 = vmatprep.subr.bf16.mxu0 0
        %659 = vmatpush1.bf16.msra.mxu0 0
        %660 = vmatprep.subr.bf16.mxu0 0
        %661 = vmatpush1.bf16.msra.mxu0 0
        %662 = vmatprep.subr.bf16.mxu0 0
        %663 = vmatpush1.bf16.msra.mxu0 0
        %664 = vmatprep.subr.bf16.mxu0 0
        %665 = vmatpush1.bf16.msra.mxu0 0
        %666 = vmatprep.subr.bf16.mxu0 0
        %667 = vmatpush1.bf16.msra.mxu0 0
        %668 = vmatprep.subr.bf16.mxu0 0
        %669 = vmatpush1.bf16.msra.mxu0 0
        %670 = vmatprep.subr.bf16.mxu0 0
        %671 = vmatpush1.bf16.msra.mxu0 0
        %672 = vmatprep.subr.bf16.mxu0 0
        %673 = vmatpush1.bf16.msra.mxu0 0
        %674 = vmatprep.subr.bf16.mxu0 0
        %675 = vmatpush1.bf16.msra.mxu0 0
        %676 = vmatprep.subr.bf16.mxu0 0
        %677 = vmatpush1.bf16.msra.mxu0 0
        %678 = vmatprep.subr.bf16.mxu0 0
        %679 = vmatpush1.bf16.msra.mxu0 0
        %680 = vmatprep.subr.bf16.mxu0 0
        %681 = vmatpush1.bf16.msra.mxu0 0
        %682 = vmatprep.subr.bf16.mxu0 0
        %683 = vmatpush1.bf16.msra.mxu0 0
        %684 = vmatprep.subr.bf16.mxu0 0
        %685 = vmatpush1.bf16.msra.mxu0 0
        %686 = vmatprep.mubr.bf16.mxu0 0
        %687 = vmatmul.mubr.bf16.gmra.mrb[0].mxu0 %v648
        %v688 = vpop.f32.mrb[0].mxu0
        %v689 = vadd.f32 0.0, %v688
        %v690 = vpop.f32.mrb[0].mxu0
        %v691 = vpop.f32.mrb[0].mxu0
        %v692 = vpop.f32.mrb[0].mxu0
        %693 = vdwg.mxu0
        %694 = vrot.lane.b32.xlu0 %v397, 64
        %v695 = vpop.permute.xlu0 %694
        %v697 = vsel %vm403, %v642, 0
        %v700 = vsel %vm650, %v695, 0
        %702 = vmatprep.subr.bf16.mxu0 0
        %703 = vmatpush1.bf16.msra.mxu0 %v700
        %704 = vmatprep.subr.bf16.mxu0 0
        %705 = vmatpush1.bf16.msra.mxu0 0
        %706 = vmatprep.subr.bf16.mxu0 0
        %707 = vmatpush1.bf16.msra.mxu0 0
        %708 = vmatprep.subr.bf16.mxu0 0
        %709 = vmatpush1.bf16.msra.mxu0 0
        %710 = vmatprep.subr.bf16.mxu0 0
        %711 = vmatpush1.bf16.msra.mxu0 0
        %712 = vmatprep.subr.bf16.mxu0 0
        %713 = vmatpush1.bf16.msra.mxu0 0
        %714 = vmatprep.subr.bf16.mxu0 0
        %715 = vmatpush1.bf16.msra.mxu0 0
        %716 = vmatprep.subr.bf16.mxu0 0
        %717 = vmatpush1.bf16.msra.mxu0 0
        %718 = vmatprep.subr.bf16.mxu0 0
        %719 = vmatpush1.bf16.msra.mxu0 0
        %720 = vmatprep.subr.bf16.mxu0 0
        %721 = vmatpush1.bf16.msra.mxu0 0
        %722 = vmatprep.subr.bf16.mxu0 0
        %723 = vmatpush1.bf16.msra.mxu0 0
        %724 = vmatprep.subr.bf16.mxu0 0
        %725 = vmatpush1.bf16.msra.mxu0 0
        %726 = vmatprep.subr.bf16.mxu0 0
        %727 = vmatpush1.bf16.msra.mxu0 0
        %728 = vmatprep.subr.bf16.mxu0 0
        %729 = vmatpush1.bf16.msra.mxu0 0
        %730 = vmatprep.subr.bf16.mxu0 0
        %731 = vmatpush1.bf16.msra.mxu0 0
        %732 = vmatprep.subr.bf16.mxu0 0
        %733 = vmatpush1.bf16.msra.mxu0 0
        %734 = vmatprep.mubr.bf16.mxu0 0
        %735 = vmatmul.mubr.bf16.gmra.mrb[0].mxu0 %v697
        %v736 = vpop.f32.mrb[0].mxu0
        %v737 = vadd.f32 0.0, %v736
        %v738 = vpop.f32.mrb[0].mxu0
        %v739 = vpop.f32.mrb[0].mxu0
        %v740 = vpop.f32.mrb[0].mxu0
        %741 = vdwg.mxu0
        %742 = vrot.lane.b32.xlu0 %v398, 64
        %v743 = vpop.permute.xlu0 %742
        %v745 = vsel %vm403, %v643, 0
        %v748 = vsel %vm650, %v743, 0
        %750 = vmatprep.subr.bf16.mxu0 0
        %751 = vmatpush1.bf16.msra.mxu0 %v748
        %752 = vmatprep.subr.bf16.mxu0 0
        %753 = vmatpush1.bf16.msra.mxu0 0
        %754 = vmatprep.subr.bf16.mxu0 0
        %755 = vmatpush1.bf16.msra.mxu0 0
        %756 = vmatprep.subr.bf16.mxu0 0
        %757 = vmatpush1.bf16.msra.mxu0 0
        %758 = vmatprep.subr.bf16.mxu0 0
        %759 = vmatpush1.bf16.msra.mxu0 0
        %760 = vmatprep.subr.bf16.mxu0 0
        %761 = vmatpush1.bf16.msra.mxu0 0
        %762 = vmatprep.subr.bf16.mxu0 0
        %763 = vmatpush1.bf16.msra.mxu0 0
        %764 = vmatprep.subr.bf16.mxu0 0
        %765 = vmatpush1.bf16.msra.mxu0 0
        %766 = vmatprep.subr.bf16.mxu0 0
        %767 = vmatpush1.bf16.msra.mxu0 0
        %768 = vmatprep.subr.bf16.mxu0 0
        %769 = vmatpush1.bf16.msra.mxu0 0
        %770 = vmatprep.subr.bf16.mxu0 0
        %771 = vmatpush1.bf16.msra.mxu0 0
        %772 = vmatprep.subr.bf16.mxu0 0
        %773 = vmatpush1.bf16.msra.mxu0 0
        %774 = vmatprep.subr.bf16.mxu0 0
        %775 = vmatpush1.bf16.msra.mxu0 0
        %776 = vmatprep.subr.bf16.mxu0 0
        %777 = vmatpush1.bf16.msra.mxu0 0
        %778 = vmatprep.subr.bf16.mxu0 0
        %779 = vmatpush1.bf16.msra.mxu0 0
        %780 = vmatprep.subr.bf16.mxu0 0
        %781 = vmatpush1.bf16.msra.mxu0 0
        %782 = vmatprep.mubr.bf16.mxu0 0
        %783 = vmatmul.mubr.bf16.gmra.mrb[0].mxu0 %v745
        %v784 = vpop.f32.mrb[0].mxu0
        %v785 = vadd.f32 0.0, %v784
        %v786 = vpop.f32.mrb[0].mxu0
        %v787 = vpop.f32.mrb[0].mxu0
        %v788 = vpop.f32.mrb[0].mxu0
        %789 = vdwg.mxu0
        %790 = vrot.lane.b32.xlu0 %v399, 64
        %v791 = vpop.permute.xlu0 %790
        %v793 = vsel %vm403, %v644, 0
        %v796 = vsel %vm650, %v791, 0
        %798 = vmatprep.subr.bf16.mxu0 0
        %799 = vmatpush1.bf16.msra.mxu0 %v796
        %800 = vmatprep.subr.bf16.mxu0 0
        %801 = vmatpush1.bf16.msra.mxu0 0
        %802 = vmatprep.subr.bf16.mxu0 0
        %803 = vmatpush1.bf16.msra.mxu0 0
        %804 = vmatprep.subr.bf16.mxu0 0
        %805 = vmatpush1.bf16.msra.mxu0 0
        %806 = vmatprep.subr.bf16.mxu0 0
        %807 = vmatpush1.bf16.msra.mxu0 0
        %808 = vmatprep.subr.bf16.mxu0 0
        %809 = vmatpush1.bf16.msra.mxu0 0
        %810 = vmatprep.subr.bf16.mxu0 0
        %811 = vmatpush1.bf16.msra.mxu0 0
        %812 = vmatprep.subr.bf16.mxu0 0
        %813 = vmatpush1.bf16.msra.mxu0 0
        %814 = vmatprep.subr.bf16.mxu0 0
        %815 = vmatpush1.bf16.msra.mxu0 0
        %816 = vmatprep.subr.bf16.mxu0 0
        %817 = vmatpush1.bf16.msra.mxu0 0
        %818 = vmatprep.subr.bf16.mxu0 0
        %819 = vmatpush1.bf16.msra.mxu0 0
        %820 = vmatprep.subr.bf16.mxu0 0
        %821 = vmatpush1.bf16.msra.mxu0 0
        %822 = vmatprep.subr.bf16.mxu0 0
        %823 = vmatpush1.bf16.msra.mxu0 0
        %824 = vmatprep.subr.bf16.mxu0 0
        %825 = vmatpush1.bf16.msra.mxu0 0
        %826 = vmatprep.subr.bf16.mxu0 0
        %827 = vmatpush1.bf16.msra.mxu0 0
        %828 = vmatprep.subr.bf16.mxu0 0
        %829 = vmatpush1.bf16.msra.mxu0 0
        %830 = vmatprep.mubr.bf16.mxu0 0
        %831 = vmatmul.mubr.bf16.gmra.mrb[0].mxu0 %v793
        %v832 = vpop.f32.mrb[0].mxu0
        %v833 = vadd.f32 0.0, %v832
        %v834 = vpop.f32.mrb[0].mxu0
        %v835 = vpop.f32.mrb[0].mxu0
        %v836 = vpop.f32.mrb[0].mxu0
        %837 = vdwg.mxu0
        %839 = vrot.lane.b32.xlu0 %v737, 8
        %v840 = vpop.permute.xlu0 %839
        %843 = vrot.lane.b32.xlu0 %v785, 16
        %v844 = vpop.permute.xlu0 %843
        %847 = vrot.lane.b32.xlu0 %v833, 24
        %v848 = vpop.permute.xlu0 %847
        %v850 = vsel %vm403, %v689, %v840
        %vm851 = vcmask 130048
        %v852 = vsel %vm851, %v850, %v844
        %vm853 = vcmask 195584
        %v854 = vsel %vm853, %v852, %v848
        %v855 = vpack.c.bf16 %v854, %v854
        %v856 = vld [vmem:[%s7] sm:$0x3f]
        %v857 = vld [vmem:[%s3] sm:$0xf]
        %v858 = vld [vmem:[%s3 + $0x4] sm:$0xf]
        %v859 = vld [vmem:[%s3 + $0x8] sm:$0xf]
        %v860 = vld [vmem:[%s3 + $0xc] sm:$0xf]
        %v861 = vlaneseq
        %v862 = vshrl.u32 %v861, 7
        %v863 = vsub.s32 0, %v862
        %v864 = vrot.slane %v856, %v863
        %v869 = vunpack.c.l.b16 %v857
        %v870 = vunpack.c.l.b16 %v858
        %v871 = vunpack.c.l.b16 %v859
        %v872 = vunpack.c.l.b16 %v860
        %v873 = vpack.c.b16 %v870, %v869
        %v874 = vpack.c.b16 %v872, %v871
        %v878 = vsel %vm342, %v855, 0
        %880 = vmatprep.subr.bf16.mxu0 0
        %881 = vmatpush1.bf16.msra.mxu0 %v873
        %882 = vmatprep.subr.bf16.mxu0 0
        %883 = vmatpush1.bf16.msra.mxu0 %v874
        %884 = vmatprep.subr.bf16.mxu0 0
        %885 = vmatpush1.bf16.msra.mxu0 0
        %886 = vmatprep.subr.bf16.mxu0 0
        %887 = vmatpush1.bf16.msra.mxu0 0
        %888 = vmatprep.subr.bf16.mxu0 0
        %889 = vmatpush1.bf16.msra.mxu0 0
        %890 = vmatprep.subr.bf16.mxu0 0
        %891 = vmatpush1.bf16.msra.mxu0 0
        %892 = vmatprep.subr.bf16.mxu0 0
        %893 = vmatpush1.bf16.msra.mxu0 0
        %894 = vmatprep.subr.bf16.mxu0 0
        %895 = vmatpush1.bf16.msra.mxu0 0
        %896 = vmatprep.subr.bf16.mxu0 0
        %897 = vmatpush1.bf16.msra.mxu0 0
        %898 = vmatprep.subr.bf16.mxu0 0
        %899 = vmatpush1.bf16.msra.mxu0 0
        %900 = vmatprep.subr.bf16.mxu0 0
        %901 = vmatpush1.bf16.msra.mxu0 0
        %902 = vmatprep.subr.bf16.mxu0 0
        %903 = vmatpush1.bf16.msra.mxu0 0
        %904 = vmatprep.subr.bf16.mxu0 0
        %905 = vmatpush1.bf16.msra.mxu0 0
        %906 = vmatprep.subr.bf16.mxu0 0
        %907 = vmatpush1.bf16.msra.mxu0 0
        %908 = vmatprep.subr.bf16.mxu0 0
        %909 = vmatpush1.bf16.msra.mxu0 0
        %910 = vmatprep.subr.bf16.mxu0 0
        %911 = vmatpush1.bf16.msra.mxu0 0
        %912 = vmatprep.mubr.bf16.mxu0 0
        %913 = vmatmul.mubr.bf16.gmra.mrb[0].mxu0 %v878
        %v914 = vpop.f32.mrb[0].mxu0
        %v915 = vadd.f32 %v864, %v914
        %v916 = vpop.f32.mrb[0].mxu0
        %v917 = vpop.f32.mrb[0].mxu0
        %v918 = vpop.f32.mrb[0].mxu0
        %919 = vdwg.mxu0
        %v920 = vadd.f32 %v915, %v317
        %v921 = vsel %vm342, %v920, 0.0
        %922 = vadd.xlane.f32.xlu0 %v921
        %v923 = vpop.xlane.xlu0 %922
        %v924 = vrcp.pop 32.0
        %v925 = vmul.f32 %v923, %v924
        %v926 = vsub.f32 %v920, %v925
        %v927 = vmul.f32 %v926, %v926
        %v928 = vsel %vm342, %v927, 0.0
        %929 = vadd.xlane.f32.xlu0 %v928
        %v930 = vpop.xlane.xlu0 %929
        %v931 = vmul.f32 %v930, %v924
        %v932 = vadd.f32 %v931, 1e-12
        %v933 = vrsqrt.pop %v932
        %v934 = vmul.f32 %v926, %v933
        %v935 = vlaneseq
        %v936 = vshrl.u32 %v935, 7
        %v937 = vsub.s32 1, %v936
        %v938 = vrot.slane %v856, %v937
        %v939 = vmul.f32 %v938, %v934
        %v940 = vlaneseq
        %v941 = vshrl.u32 %v940, 7
        %v942 = vsub.s32 2, %v941
        %v943 = vrot.slane %v856, %v942
        %v944 = vadd.f32 %v939, %v943
        %v945 = vpack.c.bf16 %v944, %v944
        %v946 = vld [vmem:[#allocation2] sm:$0xf]
        %v947 = vld [vmem:[#allocation2 + $0x4] sm:$0xf]
        %v948 = vld [vmem:[#allocation2 + $0x8] sm:$0xf]
        %v949 = vld [vmem:[#allocation2 + $0xc] sm:$0xf]
        %v950 = vld [vmem:[%s5] sm:$0x1]
        %v952 = vlaneseq
        %v953 = vshrl.u32 %v952, 7
        %v954 = vsub.s32 0, %v953
        %v955 = vrot.slane %v950, %v954
        %v961 = vunpack.c.l.b16 %v946
        %v962 = vunpack.c.l.b16 %v947
        %v963 = vunpack.c.l.b16 %v948
        %v964 = vunpack.c.l.b16 %v949
        %v965 = vpack.c.b16 %v962, %v961
        %v966 = vpack.c.b16 %v964, %v963
        %v970 = vsel %vm342, %v945, 0
        %972 = vmatprep.subr.bf16.mxu0 0
        %973 = vmatpush1.bf16.msra.mxu0 %v965
        %974 = vmatprep.subr.bf16.mxu0 0
        %975 = vmatpush1.bf16.msra.mxu0 %v966
        %976 = vmatprep.subr.bf16.mxu0 0
        %977 = vmatpush1.bf16.msra.mxu0 0
        %978 = vmatprep.subr.bf16.mxu0 0
        %979 = vmatpush1.bf16.msra.mxu0 0
        %980 = vmatprep.subr.bf16.mxu0 0
        %981 = vmatpush1.bf16.msra.mxu0 0
        %982 = vmatprep.subr.bf16.mxu0 0
        %983 = vmatpush1.bf16.msra.mxu0 0
        %984 = vmatprep.subr.bf16.mxu0 0
        %985 = vmatpush1.bf16.msra.mxu0 0
        %986 = vmatprep.subr.bf16.mxu0 0
        %987 = vmatpush1.bf16.msra.mxu0 0
        %988 = vmatprep.subr.bf16.mxu0 0
        %989 = vmatpush1.bf16.msra.mxu0 0
        %990 = vmatprep.subr.bf16.mxu0 0
        %991 = vmatpush1.bf16.msra.mxu0 0
        %992 = vmatprep.subr.bf16.mxu0 0
        %993 = vmatpush1.bf16.msra.mxu0 0
        %994 = vmatprep.subr.bf16.mxu0 0
        %995 = vmatpush1.bf16.msra.mxu0 0
        %996 = vmatprep.subr.bf16.mxu0 0
        %997 = vmatpush1.bf16.msra.mxu0 0
        %998 = vmatprep.subr.bf16.mxu0 0
        %999 = vmatpush1.bf16.msra.mxu0 0
        %1000 = vmatprep.subr.bf16.mxu0 0
        %1001 = vmatpush1.bf16.msra.mxu0 0
        %1002 = vmatprep.subr.bf16.mxu0 0
        %1003 = vmatpush1.bf16.msra.mxu0 0
        %1004 = vmatprep.mubr.bf16.mxu0 0
        %1005 = vmatmul.mubr.bf16.gmra.mrb[0].mxu0 %v970
        %v1006 = vpop.f32.mrb[0].mxu0
        %v1007 = vadd.f32 %v955, %v1006
        %v1008 = vpop.f32.mrb[0].mxu0
        %v1009 = vpop.f32.mrb[0].mxu0
        %v1010 = vpop.f32.mrb[0].mxu0
        %1011 = vdwg.mxu0
        %v1012 = vmax.f32 %v1007, 0.0
        %v1013 = vpack.c.bf16 %v1012, %v1012
        %v1014 = vld [vmem:[%s6] sm:$0xf]
        %v1015 = vld [vmem:[%s6 + $0x4] sm:$0xf]
        %v1016 = vld [vmem:[%s6 + $0x8] sm:$0xf]
        %v1017 = vld [vmem:[%s6 + $0xc] sm:$0xf]
        %v1018 = vld [vmem:[%s6 + $0x10] sm:$0xf]
        %v1019 = vld [vmem:[%s6 + $0x14] sm:$0xf]
        %v1020 = vld [vmem:[%s6 + $0x18] sm:$0xf]
        %v1021 = vld [vmem:[%s6 + $0x1c] sm:$0xf]
        %v1022 = vlaneseq
        %v1023 = vshrl.u32 %v1022, 7
        %v1024 = vsub.s32 3, %v1023
        %v1025 = vrot.slane %v856, %v1024
        %v1034 = vunpack.c.l.b16 %v1014
        %v1035 = vunpack.c.l.b16 %v1015
        %v1036 = vunpack.c.l.b16 %v1016
        %v1037 = vunpack.c.l.b16 %v1017
        %v1038 = vunpack.c.l.b16 %v1018
        %v1039 = vunpack.c.l.b16 %v1019
        %v1040 = vunpack.c.l.b16 %v1020
        %v1041 = vunpack.c.l.b16 %v1021
        %v1042 = vpack.c.b16 %v1035, %v1034
        %v1043 = vpack.c.b16 %v1037, %v1036
        %v1044 = vpack.c.b16 %v1039, %v1038
        %v1045 = vpack.c.b16 %v1041, %v1040
        %vm1050 = vcmask 523264
        %v1052 = vsel %vm1050, %v1013, 0
        %1054 = vmatprep.subr.bf16.mxu0 0
        %1055 = vmatpush1.bf16.msra.mxu0 %v1042
        %1056 = vmatprep.subr.bf16.mxu0 0
        %1057 = vmatpush1.bf16.msra.mxu0 %v1043
        %1058 = vmatprep.subr.bf16.mxu0 0
        %1059 = vmatpush1.bf16.msra.mxu0 %v1044
        %1060 = vmatprep.subr.bf16.mxu0 0
        %1061 = vmatpush1.bf16.msra.mxu0 %v1045
        %1062 = vmatprep.subr.bf16.mxu0 0
        %1063 = vmatpush1.bf16.msra.mxu0 0
        %1064 = vmatprep.subr.bf16.mxu0 0
        %1065 = vmatpush1.bf16.msra.mxu0 0
        %1066 = vmatprep.subr.bf16.mxu0 0
        %1067 = vmatpush1.bf16.msra.mxu0 0
        %1068 = vmatprep.subr.bf16.mxu0 0
        %1069 = vmatpush1.bf16.msra.mxu0 0
        %1070 = vmatprep.subr.bf16.mxu0 0
        %1071 = vmatpush1.bf16.msra.mxu0 0
        %1072 = vmatprep.subr.bf16.mxu0 0
        %1073 = vmatpush1.bf16.msra.mxu0 0
        %1074 = vmatprep.subr.bf16.mxu0 0
        %1075 = vmatpush1.bf16.msra.mxu0 0
        %1076 = vmatprep.subr.bf16.mxu0 0
        %1077 = vmatpush1.bf16.msra.mxu0 0
        %1078 = vmatprep.subr.bf16.mxu0 0
        %1079 = vmatpush1.bf16.msra.mxu0 0
        %1080 = vmatprep.subr.bf16.mxu0 0
        %1081 = vmatpush1.bf16.msra.mxu0 0
        %1082 = vmatprep.subr.bf16.mxu0 0
        %1083 = vmatpush1.bf16.msra.mxu0 0
        %1084 = vmatprep.subr.bf16.mxu0 0
        %1085 = vmatpush1.bf16.msra.mxu0 0
        %1086 = vmatprep.mubr.bf16.mxu0 0
        %1087 = vmatmul.mubr.bf16.gmra.mrb[0].mxu0 %v1052
        %v1088 = vpop.f32.mrb[0].mxu0
        %v1089 = vadd.f32 %v1025, %v1088
        %v1090 = vpop.f32.mrb[0].mxu0
        %v1091 = vpop.f32.mrb[0].mxu0
        %v1092 = vpop.f32.mrb[0].mxu0
        %1093 = vdwg.mxu0
        %v1094 = vadd.f32 %v1089, %v944
        %v1095 = vsel %vm342, %v1094, 0.0
        %1096 = vadd.xlane.f32.xlu0 %v1095
        %v1097 = vpop.xlane.xlu0 %1096
        %v1098 = vmul.f32 %v1097, %v924
        %v1099 = vsub.f32 %v1094, %v1098
        %v1100 = vmul.f32 %v1099, %v1099
        %v1101 = vsel %vm342, %v1100, 0.0
        %1102 = vadd.xlane.f32.xlu0 %v1101
        %v1103 = vpop.xlane.xlu0 %1102
        %v1104 = vmul.f32 %v1103, %v924
        %v1105 = vadd.f32 %v1104, 1e-12
        %v1106 = vrsqrt.pop %v1105
        %v1107 = vmul.f32 %v1099, %v1106
        %v1108 = vlaneseq
        %v1109 = vshrl.u32 %v1108, 7
        %v1110 = vsub.s32 4, %v1109
        %v1111 = vrot.slane %v856, %v1110
        %v1112 = vmul.f32 %v1111, %v1107
        %v1113 = vlaneseq
        %v1114 = vshrl.u32 %v1113, 7
        %v1115 = vsub.s32 5, %v1114
        %v1116 = vrot.slane %v856, %v1115
        %v1117 = vadd.f32 %v1112, %v1116
        %v1118 = vsel %vm342, %v1117, 0.0
        %1119 = vst [vmem:[%s315] sm:$0xff] %v1118
        %p1120 = scmp.lt.s32.totalorder %s20, 1
        %s1121 = scalar_select %p1120, %s20, 1
        %s1122 = smul.addr %s1121, 8
        %s1123 = scalar_lea.vmem %s8, %s1122
        // Predicated region
        $region57: #{attention_forward.1} parent=51 // pred_check
          %p1124 = pneg %p211
        $region58: #{attention_forward.1} parent=51 // pred_check_branch
          %1126 = sbr.rel (%p1124) target = $region60
        $region59: #{attention_forward.1} parent=51 // pred_region
          _
        $region60: #{attention_forward.1} parent=51 // pred_fallthru
          _
      $region52: #{attention_forward.1} parent=5 // pred_fallthru
        _
      %p1127 = scmp.le.s32.totalorder 2, %s15
      // Predicated region
      $region61: #{attention_forward.1} parent=5 // pred_check
        %p1128 = pneg %p1127
      $region62: #{attention_forward.1} parent=5 // pred_check_branch
        %1130 = sbr.rel (%p1128) target = $region64
      $region63: #{attention_forward.1} parent=5 // pred_region
        %s1131 = ssub.s32 %s15, 2
        // Predicated region
        $region65: #{attention_forward.1} parent=63 // pred_check
          %p1132 = pneg %p217
        $region66: #{attention_forward.1} parent=63 // pred_check_branch
          %1134 = sbr.rel (%p1132) target = $region68
        $region67: #{attention_forward.1} parent=63 // pred_region
          %p1135 = scmp.lt.s32.totalorder %s21, 1
          %s1136 = scalar_select %p1135, %s21, 1
          %s1137 = smul.addr %s1136, 8
          %s1138 = scalar_lea.vmem %s8, %s1137
        $region68: #{attention_forward.1} parent=63 // pred_fallthru
          _
      $region64: #{attention_forward.1} parent=5 // pred_fallthru
        _
    $region6: #{attention_forward.1} parent=1 // loop_footer
      %s19 = sadd.s32 1, %s15
    $region7: #{attention_forward.1} parent=1 // loop_footer_branch
      %14 = sbr.rel target = $region3
    $region8: #{attention_forward.1} parent=1 // loop_exit
      _
    %1139 = vsyncpa [#allocation3], 1
    %s1140 = scalar_lea.sflag [#allocation3], 1
    %1141 = vsyncpa %s1140, 1

</llo_original>
